<compile_context>
chip_gen: v7x
topology: tpu7x:2x2x1
jax: 0.10.0
libtpu: 0.0.40
codegen_flags: <defaults>
</compile_context>

<pallas_src>
import math

import jax
import jax.numpy as jnp
from jax.experimental import pallas as pl
from jax.experimental.pallas import tpu as pltpu


def _round_up(a: int, b: int) -> int:
    return ((a + b - 1) // b) * b


# ---------------------------------------------------------------------------
# Stage 1: fused input projection for both directions:  x @ W_cat + b_cat
# ---------------------------------------------------------------------------
def _input_proj_kernel(x_ref, w_ref, b_ref, o_ref):
    # x_ref: [TN, I], w_ref: [I, 8H], b_ref: [1, 8H], o_ref: [TN, 8H]
    o_ref[...] = (
        jnp.dot(x_ref[...], w_ref[...], preferred_element_type=jnp.float32)
        + b_ref[...]
    )


# ---------------------------------------------------------------------------
# Stage 2: bidirectional LSTM recurrence (sequential grid over time).
# ---------------------------------------------------------------------------
def _bilstm_step_kernel(gxf_ref, gxb_ref, whf_ref, whb_ref,
                        of_ref, ob_ref, hf, cf, hb, cb):
    # gxf_ref/gxb_ref: [1, B, 4H] precomputed input gates (fwd / time-reversed bwd)
    # whf_ref/whb_ref: [H, 4H] recurrent weights (W_hh^T), resident in VMEM
    # of_ref/ob_ref  : [1, B, H] hidden-state outputs for this step
    # hf, cf, hb, cb : [B, H] f32 VMEM scratch carrying the LSTM state
    H = hf.shape[-1]

    @pl.when(pl.program_id(0) == 0)
    def _init():
        hf[...] = jnp.zeros_like(hf)
        cf[...] = jnp.zeros_like(cf)
        hb[...] = jnp.zeros_like(hb)
        cb[...] = jnp.zeros_like(cb)

    def cell(gx, h, c, w_t):
        # PyTorch LSTMCell, gate order (i, f, g, o); gx already includes biases.
        gates = gx + jnp.dot(h, w_t, preferred_element_type=jnp.float32)  # [B, 4H]
        i = jax.nn.sigmoid(gates[:, 0 * H:1 * H])
        f = jax.nn.sigmoid(gates[:, 1 * H:2 * H])
        g = jnp.tanh(gates[:, 2 * H:3 * H])
        o = jax.nn.sigmoid(gates[:, 3 * H:4 * H])
        c_new = f * c + i * g
        h_new = o * jnp.tanh(c_new)
        return h_new, c_new

    hf_new, cf_new = cell(gxf_ref[0], hf[...], cf[...], whf_ref[...])
    hb_new, cb_new = cell(gxb_ref[0], hb[...], cb[...], whb_ref[...])

    hf[...] = hf_new
    cf[...] = cf_new
    hb[...] = hb_new
    cb[...] = cb_new

    of_ref[0] = hf_new.astype(of_ref.dtype)
    ob_ref[0] = hb_new.astype(ob_ref.dtype)


# ---------------------------------------------------------------------------
# Wrapper
# ---------------------------------------------------------------------------
def moglstm_forward(x, params):
    """x: [B, S, I].  params: PyTorch-layout LSTMCell weights for both cells.

    Returns cat(forward, flip(backward), -1).unsqueeze(0) exactly like the
    PyTorch module: [1, S, 2H] when B == 1 (the module's intended use),
    [1, S, B, 2H] otherwise.
    """
    f32 = jnp.float32
    B, S, I = x.shape
    H = params["w_hh_f"].shape[1]
    G = 4 * H

    x = x.astype(f32)
    # Time-major layout: batch on sublanes, features on lanes.
    x_sb = jnp.transpose(x, (1, 0, 2))          # [S, B, I]
    N = S * B
    x_flat = x_sb.reshape(N, I)

    # Fused projection weights for both directions -> lane-dense [I, 8H] matmul.
    w_cat = jnp.concatenate(
        [params["w_ih_f"].T.astype(f32), params["w_ih_b"].T.astype(f32)], axis=1)
    b_cat = jnp.concatenate(
        [(params["b_ih_f"] + params["b_hh_f"]).astype(f32),
         (params["b_ih_b"] + params["b_hh_b"]).astype(f32)], axis=0)[None, :]  # [1, 8H]

    # Row tiling: multiple of 8 (f32 sublane), capped at 512 to stay well inside
    # the smallest scoped-VMEM budget (v5e 16 MiB / v7x 32 MiB) with 2x buffering.
    TN = min(512, _round_up(N, 8))
    N_pad = _round_up(N, TN)
    if N_pad != N:
        x_flat = jnp.pad(x_flat, ((0, N_pad - N), (0, 0)))

    gx_flat = pl.pallas_call(
        _input_proj_kernel,
        out_shape=jax.ShapeDtypeStruct((N_pad, 2 * G), f32),
        grid=(N_pad // TN,),
        in_specs=[
            pl.BlockSpec((TN, I), lambda i: (i, 0)),
            pl.BlockSpec((I, 2 * G), lambda i: (0, 0)),   # weights stay resident
            pl.BlockSpec((1, 2 * G), lambda i: (0, 0)),   # bias stays resident
        ],
        out_specs=pl.BlockSpec((TN, 2 * G), lambda i: (i, 0)),
        compiler_params=pltpu.CompilerParams(
            dimension_semantics=("parallel",),
            vmem_limit_bytes=32 * 1024 * 1024,
        ),
    )(x_flat, w_cat, b_cat)

    gx = gx_flat[:N].reshape(S, B, 2 * G)
    gx_f = gx[..., :G]     # [S, B, 4H] forward-direction input gates
    gx_b = gx[..., G:]     # [S, B, 4H] backward-direction input gates

    whhT_f = params["w_hh_f"].T.astype(f32)    # [H, 4H]
    whhT_b = params["w_hh_b"].T.astype(f32)    # [H, 4H]

    out_f, out_b_aligned = pl.pallas_call(
        _bilstm_step_kernel,
        out_shape=(jax.ShapeDtypeStruct((S, B, H), f32),
                   jax.ShapeDtypeStruct((S, B, H), f32)),
        grid=(S,),
        in_specs=[
            pl.BlockSpec((1, B, G), lambda t: (t, 0, 0)),
            pl.BlockSpec((1, B, G), lambda t: (S - 1 - t, 0, 0)),  # flip via index_map
            pl.BlockSpec((H, G), lambda t: (0, 0)),
            pl.BlockSpec((H, G), lambda t: (0, 0)),
        ],
        out_specs=(
            pl.BlockSpec((1, B, H), lambda t: (t, 0, 0)),
            pl.BlockSpec((1, B, H), lambda t: (S - 1 - t, 0, 0)),  # already "backward_reverse"
        ),
        scratch_shapes=[pltpu.VMEM((B, H), f32)] * 4,  # hf, cf, hb, cb
        compiler_params=pltpu.CompilerParams(
            dimension_semantics=("arbitrary",),        # sequential: state carried in scratch
            vmem_limit_bytes=32 * 1024 * 1024,
        ),
    )(gx_f, gx_b, whhT_f, whhT_b)

    cat = jnp.concatenate([out_f, out_b_aligned], axis=-1)  # [S, B, 2H]
    if B == 1:
        cat = cat[:, 0, :]                                   # torch .squeeze(1)
    return cat[None]                                         # torch .unsqueeze(0)


# ---------------------------------------------------------------------------
# Pure-JAX reference (mirrors the PyTorch forward exactly)
# ---------------------------------------------------------------------------
def _lstm_cell_ref(x, h, c, w_ih, w_hh, b_ih, b_hh):
    gates = x @ w_ih.T + b_ih + h @ w_hh.T + b_hh
    i, f, g, o = jnp.split(gates, 4, axis=-1)
    c = jax.nn.sigmoid(f) * c + jax.nn.sigmoid(i) * jnp.tanh(g)
    h = jax.nn.sigmoid(o) * jnp.tanh(c)
    return h, c


def moglstm_ref(x, params):
    B, S, I = x.shape
    H = params["w_hh_f"].shape[1]
    hf = jnp.zeros((B, H), jnp.float32)
    cf = jnp.zeros((B, H), jnp.float32)
    fwd = []
    for t in range(S):
        hf, cf = _lstm_cell_ref(x[:, t, :], hf, cf, params["w_ih_f"],
                                params["w_hh_f"], params["b_ih_f"], params["b_hh_f"])
        fwd.append(hf)
    forward = jnp.stack(fwd, axis=0)                      # [S, B, H]
    hb = jnp.zeros((B, H), jnp.float32)
    cb = jnp.zeros((B, H), jnp.float32)
    bwd = []
    xr = x[:, ::-1, :]
    for t in range(S):
        hb, cb = _lstm_cell_ref(xr[:, t, :], hb, cb, params["w_ih_b"],
                                params["w_hh_b"], params["b_ih_b"], params["b_hh_b"])
        bwd.append(hb)
    backward_reverse = jnp.stack(bwd, axis=0)[::-1]       # [S, B, H]
    cat = jnp.concatenate([forward, backward_reverse], axis=-1)
    if B == 1:
        cat = cat[:, 0, :]
    return cat[None]


if __name__ == "__main__":
    key = jax.random.PRNGKey(0)
    keys = jax.random.split(key, 9)

    B, S, I, H = 1, 8, 32, 32   # module is written for batch=1 (squeeze(1))
    x = jax.random.normal(keys[0], (B, S, I), dtype=jnp.float32)

    # Synthetic LSTMCell parameters (the real module initializes via nn.LSTMCell).
    bound = 1.0 / math.sqrt(H)

    def u(k, shape):
        return jax.random.uniform(k, shape, minval=-bound, maxval=bound,
                                  dtype=jnp.float32)

    params = dict(
        w_ih_f=u(keys[1], (4 * H, I)), w_hh_f=u(keys[2], (4 * H, H)),
        b_ih_f=u(keys[3], (4 * H,)),   b_hh_f=u(keys[4], (4 * H,)),
        w_ih_b=u(keys[5], (4 * H, I)), w_hh_b=u(keys[6], (4 * H, H)),
        b_ih_b=u(keys[7], (4 * H,)),   b_hh_b=u(keys[8], (4 * H,)),
    )

    out = jax.block_until_ready(moglstm_forward(x, params))
    ref = moglstm_ref(x, params)

    assert out.shape == (1, S, 2 * H), out.shape
    assert jnp.allclose(out, ref, atol=1e-4, rtol=1e-4), \
        float(jnp.max(jnp.abs(out - ref)))

    print("KERNEL_OK")
</pallas_src>

<mosaic_0001>
module attributes {stable_mosaic.version = 11 : i64} {
  func.func @_input_proj_kernel(%arg0: i32, %arg1: memref<8x32xf32, #tpu.memory_space<vmem>>, %arg2: memref<32x256xf32, #tpu.memory_space<vmem>>, %arg3: memref<1x256xf32, #tpu.memory_space<vmem>>, %arg4: memref<8x256xf32, #tpu.memory_space<vmem>>) attributes {dimension_semantics = [#tpu.dimension_semantics<parallel>], iteration_bounds = array<i64: 1>, scalar_prefetch = 0 : i64, scratch_operands = 0 : i64, tpu.core_type = #tpu.core_type<tc>, window_params = [{transform_indices = @transform_0, window_bounds = array<i64: 8, 32>}, {pipeline_mode = #tpu.pipeline_mode<synchronous>, transform_indices = @transform_1, window_bounds = array<i64: 32, 256>}, {pipeline_mode = #tpu.pipeline_mode<synchronous>, transform_indices = @transform_2, window_bounds = array<i64: 1, 256>}, {transform_indices = @transform_3, window_bounds = array<i64: 8, 256>}]} {
    %c0 = arith.constant 0 : index
    %c0_0 = arith.constant 0 : index
    %0 = vector.load %arg1[%c0, %c0_0] : memref<8x32xf32, #tpu.memory_space<vmem>>, vector<8x32xf32>
    %c0_1 = arith.constant 0 : index
    %c0_2 = arith.constant 0 : index
    %1 = vector.load %arg2[%c0_1, %c0_2] : memref<32x256xf32, #tpu.memory_space<vmem>>, vector<32x256xf32>
    %cst = arith.constant dense<0.000000e+00> : vector<8x256xf32>
    %2 = tpu.matmul %0, %1, %cst {dimension_numbers = #tpu.dot_dimension_numbers<[1], [0], [0], [1], [0, 0, 1, 1], [], []>} : vector<8x32xf32>, vector<32x256xf32>, vector<8x256xf32> -> vector<8x256xf32>
    %c0_3 = arith.constant 0 : index
    %c0_4 = arith.constant 0 : index
    %3 = vector.load %arg3[%c0_3, %c0_4] : memref<1x256xf32, #tpu.memory_space<vmem>>, vector<1x256xf32>
    %4 = vector.broadcast %3 : vector<1x256xf32> to vector<8x256xf32>
    %5 = arith.addf %2, %4 : vector<8x256xf32>
    %c0_5 = arith.constant 0 : index
    %c0_6 = arith.constant 0 : index
    %6 = vector.load %arg4[%c0_5, %c0_6] : memref<8x256xf32, #tpu.memory_space<vmem>>, vector<8x256xf32>
    tpu.vector_store %arg4[%c0_5, %c0_6], %5 {strides = array<i32>} : memref<8x256xf32, #tpu.memory_space<vmem>>, vector<8x256xf32>,
    return
  }
  func.func @transform_0(%arg0: i32) -> (i32, i32) {
    %c0_i32 = arith.constant 0 : i32
    %c0_i32_0 = arith.constant 0 : i32
    return %arg0, %c0_i32 : i32, i32
  }
  func.func @transform_1(%arg0: i32) -> (i32, i32) {
    %c0_i32 = arith.constant 0 : i32
    %c0_i32_0 = arith.constant 0 : i32
    %c0_i32_1 = arith.constant 0 : i32
    return %c0_i32, %c0_i32_0 : i32, i32
  }
  func.func @transform_2(%arg0: i32) -> (i32, i32) {
    %c0_i32 = arith.constant 0 : i32
    %c0_i32_0 = arith.constant 0 : i32
    %c0_i32_1 = arith.constant 0 : i32
    return %c0_i32, %c0_i32_0 : i32, i32
  }
  func.func @transform_3(%arg0: i32) -> (i32, i32) {
    %c0_i32 = arith.constant 0 : i32
    %c0_i32_0 = arith.constant 0 : i32
    return %arg0, %c0_i32 : i32, i32
  }
}

</mosaic_0001>

<llo_original>
// kernel: tpu_custom_call.1
$region0: #{tpu_custom_call.1}
  #allocation0 [shape = 'u32[]', space=smem, size = 0x4, offset = 0x4, fixed_abs, tag = 'smem constant byte address 0x4 - core index']
  #allocation1 [shape = 'u32[144,128]{1,0:T(1,128)}', space=vmem, size = 0x12000, scoped, tag = 'internal scratch']
  %s0 = inlined_call_operand.hbm [shape: f32[8,32], index: 0, kind: input, shape index: {}]
  %s1 = inlined_call_operand.hbm [shape: f32[32,256], index: 1, kind: input, shape index: {}]
  %s2 = inlined_call_operand.vmem [shape: f32[1,256], index: 2, kind: input, shape index: {}]
  %s3 = inlined_call_operand.hbm [shape: f32[8,256], index: 3, kind: output, shape index: {}]
  %s4 = sld [smem:[#allocation0]]
  $region30: #{tpu_custom_call.1} parent=0
    _
  %s6 = ssub.s32 1, %s4
  %s7 = scalar_select 0, %s6, %s4
  $region1: #{tpu_custom_call.1} parent=0
    #allocation2 [shape = 'u8[4096]{0}', space=vmem, size = 0x1000, scoped, tag = 'input window, operand 0, single buffered']
    #allocation3 [shape = 's32[1]{0}', space=sflag, size = 0x4, scoped, tag = 'scoped memory for tpu_custom_call.1']
    #allocation4 [shape = 's32[1]{0}', space=sflag, size = 0x4, scoped, tag = 'scoped memory for tpu_custom_call.1']
    #allocation5 [shape = 'u8[32768]{0}', space=vmem, size = 0x8000, scoped, tag = 'input window, operand 1, single buffered']
    #allocation6 [shape = 's32[1]{0}', space=sflag, size = 0x4, scoped, tag = 'scoped memory for tpu_custom_call.1']
    #allocation7 [shape = 'u8[8192]{0}', space=vmem, size = 0x2000, scoped, tag = 'output window, operand 0, single buffered']
    %8 = vsyncpa [#allocation3], 0
    %9 = vsyncpa [#allocation6], 0
    %10 = vsyncpa [#allocation4], 0
    // Predicated region
    $region2: #{tpu_custom_call.1} parent=1 // pred_check
      _
    $region3: #{tpu_custom_call.1} parent=1 // pred_check_branch
      %12 = sbr.rel (0) target = $region5
    $region4: #{tpu_custom_call.1} parent=1 // pred_region
      %s14 = ssub.s32 128, 128
      %15 = vsyncadd [#allocation3], %s14
      %s17 = sshll.u32 [#allocation2], 4
      %s18 = int_to_ptr.vmem [resolvable:$true] %s17
      %20 = dma.hbm_to_vmem [thread:$0]  %s0, 128, %s18, [#allocation3]
    $region5: #{tpu_custom_call.1} parent=1 // pred_fallthru
      _
    // Predicated region
    $region6: #{tpu_custom_call.1} parent=1 // pred_check
      _
    $region7: #{tpu_custom_call.1} parent=1 // pred_check_branch
      %22 = sbr.rel (0) target = $region9
    $region8: #{tpu_custom_call.1} parent=1 // pred_region
      %s24 = ssub.s32 1024, 1024
      %25 = vsyncadd [#allocation6], %s24
      %s26 = sshll.u32 [#allocation5], 4
      %s27 = int_to_ptr.vmem [resolvable:$true] %s26
      %32 = dma.hbm_to_vmem [thread:$0]  %s1, 1024, %s27, [#allocation6], 256, 256, 16
    $region9: #{tpu_custom_call.1} parent=1 // pred_fallthru
      _
    // Predicated region
    $region10: #{tpu_custom_call.1} parent=1 // pred_check
      _
    $region11: #{tpu_custom_call.1} parent=1 // pred_check_branch
      %34 = sbr.rel (0) target = $region13
    $region12: #{tpu_custom_call.1} parent=1 // pred_region
      _
    $region13: #{tpu_custom_call.1} parent=1 // pred_fallthru
      _
    // Predicated region
    $region14: #{tpu_custom_call.1} parent=1 // pred_check
      _
    $region15: #{tpu_custom_call.1} parent=1 // pred_check_branch
      %36 = sbr.rel (0) target = $region17
    $region16: #{tpu_custom_call.1} parent=1 // pred_region
      %37 = dma.done [#allocation3], 128
    $region17: #{tpu_custom_call.1} parent=1 // pred_fallthru
      _
    // Predicated region
    $region18: #{tpu_custom_call.1} parent=1 // pred_check
      _
    $region19: #{tpu_custom_call.1} parent=1 // pred_check_branch
      %39 = sbr.rel (0) target = $region21
    $region20: #{tpu_custom_call.1} parent=1 // pred_region
      %40 = dma.done [#allocation6], 1024
    $region21: #{tpu_custom_call.1} parent=1 // pred_fallthru
      _
    %v41 = vld [vmem:[#allocation2] sm:$0xff]
    %v42 = vld [vmem:[#allocation5] sm:$0xff]
    %v43 = vld [vmem:[#allocation5 + $0x8] sm:$0xff]
    %v44 = vld [vmem:[#allocation5 + $0x10] sm:$0xff]
    %v45 = vld [vmem:[#allocation5 + $0x18] sm:$0xff]
    %v46 = vld [vmem:[#allocation5 + $0x20] sm:$0xff]
    %v47 = vld [vmem:[#allocation5 + $0x28] sm:$0xff]
    %v48 = vld [vmem:[#allocation5 + $0x30] sm:$0xff]
    %v49 = vld [vmem:[#allocation5 + $0x38] sm:$0xff]
    %v50 = vld [vmem:[%s2] sm:$0x3]
    %v52 = vlaneseq
    %v53 = vshrl.u32 %v52, 7
    %v54 = vsub.s32 0, %v53
    %v55 = vrot.slane %v50, %v54
    %v56 = vlaneseq
    %v57 = vshrl.u32 %v56, 7
    %v58 = vsub.s32 1, %v57
    %v59 = vrot.slane %v50, %v58
    %vm62 = vcmask 261120
    %v64 = vsel %vm62, %v41, 0
    %66 = vmatprep.subr.mxu0 %v43
    %67 = vmatpush1.msra.mxu0 %v42
    %68 = vmatprep.subr.mxu0 %v45
    %69 = vmatpush1.msra.mxu0 %v44
    %70 = vmatprep.subr.mxu0 %v47
    %71 = vmatpush1.msra.mxu0 %v46
    %72 = vmatprep.subr.mxu0 %v49
    %73 = vmatpush1.msra.mxu0 %v48
    %74 = vmatprep.subr.mxu0 0.0
    %75 = vmatpush1.msra.mxu0 0.0
    %76 = vmatprep.subr.mxu0 0.0
    %77 = vmatpush1.msra.mxu0 0.0
    %78 = vmatprep.subr.mxu0 0.0
    %79 = vmatpush1.msra.mxu0 0.0
    %80 = vmatprep.subr.mxu0 0.0
    %81 = vmatpush1.msra.mxu0 0.0
    %82 = vmatprep.subr.mxu0 0.0
    %83 = vmatpush1.msra.mxu0 0.0
    %84 = vmatprep.subr.mxu0 0.0
    %85 = vmatpush1.msra.mxu0 0.0
    %86 = vmatprep.subr.mxu0 0.0
    %87 = vmatpush1.msra.mxu0 0.0
    %88 = vmatprep.subr.mxu0 0.0
    %89 = vmatpush1.msra.mxu0 0.0
    %90 = vmatprep.subr.mxu0 0.0
    %91 = vmatpush1.msra.mxu0 0.0
    %92 = vmatprep.subr.mxu0 0.0
    %93 = vmatpush1.msra.mxu0 0.0
    %94 = vmatprep.subr.mxu0 0.0
    %95 = vmatpush1.msra.mxu0 0.0
    %96 = vmatprep.subr.mxu0 0.0
    %97 = vmatpush1.msra.mxu0 0.0
    %98 = vmatprep.subr.mxu0 0.0
    %99 = vmatpush1.msra.mxu0 0.0
    %100 = vmatprep.subr.mxu0 0.0
    %101 = vmatpush1.msra.mxu0 0.0
    %102 = vmatprep.subr.mxu0 0.0
    %103 = vmatpush1.msra.mxu0 0.0
    %104 = vmatprep.subr.mxu0 0.0
    %105 = vmatpush1.msra.mxu0 0.0
    %106 = vmatprep.subr.mxu0 0.0
    %107 = vmatpush1.msra.mxu0 0.0
    %108 = vmatprep.subr.mxu0 0.0
    %109 = vmatpush1.msra.mxu0 0.0
    %110 = vmatprep.subr.mxu0 0.0
    %111 = vmatpush1.msra.mxu0 0.0
    %112 = vmatprep.subr.mxu0 0.0
    %113 = vmatpush1.msra.mxu0 0.0
    %114 = vmatprep.subr.mxu0 0.0
    %115 = vmatpush1.msra.mxu0 0.0
    %116 = vmatprep.subr.mxu0 0.0
    %117 = vmatpush1.msra.mxu0 0.0
    %118 = vmatprep.subr.mxu0 0.0
    %119 = vmatpush1.msra.mxu0 0.0
    %120 = vmatprep.subr.mxu0 0.0
    %121 = vmatpush1.msra.mxu0 0.0
    %122 = vmatprep.subr.mxu0 0.0
    %123 = vmatpush1.msra.mxu0 0.0
    %124 = vmatprep.subr.mxu0 0.0
    %125 = vmatpush1.msra.mxu0 0.0
    %126 = vmatprep.subr.mxu0 0.0
    %127 = vmatpush1.msra.mxu0 0.0
    %128 = vmatprep.subr.mxu0 0.0
    %129 = vmatpush1.msra.mxu0 0.0
    %130 = vmatprep.mubr.f32.mxu0 0.0
    %131 = vmatmul.mubr.f32.gmra.mrb[0].mxu0 %v64
    %v132 = vpop.f32.mrb[0].mxu0
    %v133 = vadd.f32 %v55, %v132
    %v134 = vpop.f32.mrb[0].mxu0
    %v135 = vadd.f32 %v59, %v134
    %136 = vdwg.mxu0
    %137 = vst [vmem:[#allocation7] sm:$0xff] %v133
    %138 = vst [vmem:[#allocation7 + $0x8] sm:$0xff] %v135
    // Predicated region
    $region22: #{tpu_custom_call.1} parent=1 // pred_check
      _
    $region23: #{tpu_custom_call.1} parent=1 // pred_check_branch
      %140 = sbr.rel (0) target = $region25
    $region24: #{tpu_custom_call.1} parent=1 // pred_region
      %s142 = ssub.s32 256, 256
      %143 = vsyncadd [#allocation4], %s142
      %s145 = sshll.u32 [#allocation7], 4
      %s146 = int_to_ptr.vmem [resolvable:$true] %s145
      %148 = dma.vmem_to_hbm [thread:$0]  %s146, 256, %s3, [#allocation4]
    $region25: #{tpu_custom_call.1} parent=1 // pred_fallthru
      _
    // Predicated region
    $region26: #{tpu_custom_call.1} parent=1 // pred_check
      _
    $region27: #{tpu_custom_call.1} parent=1 // pred_check_branch
      %150 = sbr.rel (0) target = $region29
    $region28: #{tpu_custom_call.1} parent=1 // pred_region
      %151 = dma.done [#allocation4], 256
    $region29: #{tpu_custom_call.1} parent=1 // pred_fallthru
      _
    %152 = vsyncpa [#allocation3], 1
    %153 = vsyncpa [#allocation6], 1
    %154 = vsyncpa [#allocation4], 1

</llo_original>
